<compile_context>
chip_gen: v7x
topology: tpu7x:2x2x1
jax: 0.10.0
libtpu: 0.0.40
codegen_flags: <defaults>
</compile_context>

<pallas_src>
import jax
import jax.numpy as jnp
from jax.experimental import pallas as pl
from jax.experimental.pallas import tpu as pltpu

LANES = 128


def _sublane_multiple(dtype) -> int:
    # Minimum sublane multiple for clean TPU tiling: f32 -> 8, bf16 -> 16,
    # int8/fp8 -> 32.
    itemsize = jnp.dtype(dtype).itemsize
    return {4: 8, 2: 16, 1: 32}.get(itemsize, 8)


def _adaptive_relu_kernel(lam_ref, x_ref, o_ref):
    # lam_ref: (1,) scalar-prefetch ref in SMEM (f32).
    # x_ref / o_ref: (tile_rows, 128) VMEM tiles (partial edge block masked).
    lam = lam_ref[0].astype(o_ref.dtype)           # native-dtype math (bf16 stays packed)
    o_ref[...] = lam * jnp.maximum(x_ref[...], 0)


def adaptive_relu(x, lambda_param, *, block_bytes=4 * 1024 * 1024,
                  donate_input=False):
    """x: arbitrary-shape float array (e.g. NCHW). lambda_param: scalar."""
    orig_shape = x.shape
    dtype = x.dtype
    n = x.size
    if n == 0:
        return x

    itemsize = jnp.dtype(dtype).itemsize
    lam_f32 = jnp.asarray(lambda_param, dtype=jnp.float32).reshape(1)
    lam_native = lam_f32[0].astype(dtype)

    # Lane-aligned prefix goes through the kernel; a <128-element tail (only
    # when n % 128 != 0) is handled in plain jnp -- no full-tensor pad/slice.
    n_main = (n // LANES) * LANES
    if n_main == 0:
        return (lam_native * jnp.maximum(x, 0)).astype(dtype)

    x_flat = x.reshape(-1)
    rows = n_main // LANES
    if n_main == n:
        x_main = x_flat.reshape(rows, LANES)       # free bitcast, common case
    else:
        x_main = x_flat[:n_main].reshape(rows, LANES)

    # Block rows: as large as the byte budget allows, multiple of the sublane
    # count, but never so large that the grid collapses to a single step
    # (keeps DMA/compute overlapped and feeds both v7x TensorCores).
    sub = _sublane_multiple(dtype)
    if rows <= sub:
        tr = rows                                   # single block == full array dim (legal)
    else:
        tr_cap = max(sub, (block_bytes // (LANES * itemsize) // sub) * sub)
        half_rows = pl.cdiv(pl.cdiv(rows, 2), sub) * sub   # guarantees >=2 grid steps
        tr = min(tr_cap, half_rows)
    grid_n = pl.cdiv(rows, tr)                      # partial edge block is masked by Pallas

    cost = pl.CostEstimate(flops=2 * n_main,
                           bytes_accessed=2 * n_main * itemsize,
                           transcendentals=0)

    extra_kwargs = {}
    if donate_input:
        # Alias the x slab to the output when the caller can donate x
        # (halves HBM footprint; traffic unchanged).
        extra_kwargs["input_output_aliases"] = {1: 0}

    out2d = pl.pallas_call(
        _adaptive_relu_kernel,
        out_shape=jax.ShapeDtypeStruct((rows, LANES), dtype),
        grid_spec=pltpu.PrefetchScalarGridSpec(
            num_scalar_prefetch=1,                  # lambda lives in SMEM, fetched once
            grid=(grid_n,),
            in_specs=[pl.BlockSpec((tr, LANES), lambda i, lam: (i, 0))],
            out_specs=pl.BlockSpec((tr, LANES), lambda i, lam: (i, 0)),
        ),
        compiler_params=pltpu.CompilerParams(
            dimension_semantics=("parallel",),
            # 4 MiB blocks x (in + out) x double-buffer = 16 MiB; 32 MiB fits
            # every generation (v5e/v6e physical 128 MiB, v7x physical 64 MiB).
            vmem_limit_bytes=32 * 1024 * 1024,
        ),
        cost_estimate=cost,
        **extra_kwargs,
    )(lam_f32, x_main)

    if n_main == n:
        return out2d.reshape(orig_shape)

    # Ragged lane tail (< 128 elements): tiny jnp epilogue, single stitch.
    # TODO(synk): a fully copy-free ragged path would need manual DMA of the
    # partial trailing row; not worth it for <128 elements.
    tail_out = (lam_native * jnp.maximum(x_flat[n_main:], 0)).astype(dtype)
    return jnp.concatenate([out2d.reshape(-1), tail_out]).reshape(orig_shape)


if __name__ == "__main__":
    key = jax.random.PRNGKey(0)
    # NCHW input, small shapes: batch=2, channels=4, spatial=16x16.
    x = jax.random.normal(key, (2, 4, 16, 16), dtype=jnp.float32)

    # Deterministic parameter init matching __init__(lambda_init=1.0).
    lambda_param = jnp.float32(1.0)

    y = jax.block_until_ready(adaptive_relu(x, lambda_param))
    y_ref = lambda_param * jnp.maximum(x, 0.0)
    assert y.shape == x.shape and y.dtype == x.dtype
    assert jnp.allclose(y, y_ref, atol=1e-6), "mismatch vs reference (lam=1)"

    # Non-trivial lambda to make sure scaling is applied.
    lam2 = jnp.float32(0.5)
    y2 = jax.block_until_ready(adaptive_relu(x, lam2))
    y2_ref = lam2 * jnp.maximum(x, 0.0)
    assert jnp.allclose(y2, y2_ref, atol=1e-6), "mismatch vs reference (lam=0.5)"

    # Ragged shape (size % 128 != 0) exercises the kernel-prefix + jnp-tail path.
    x3 = jax.random.normal(jax.random.PRNGKey(1), (2, 3, 50), dtype=jnp.float32)
    y3 = jax.block_until_ready(adaptive_relu(x3, lam2))
    y3_ref = lam2 * jnp.maximum(x3, 0.0)
    assert y3.shape == x3.shape
    assert jnp.allclose(y3, y3_ref, atol=1e-6), "mismatch vs reference (ragged)"

    print("KERNEL_OK")
</pallas_src>

<mosaic_0001>
module attributes {stable_mosaic.version = 11 : i64} {
  func.func @_adaptive_relu_kernel(%arg0: i32, %arg1: memref<1xf32, #tpu.memory_space<smem>>, %arg2: memref<8x128xf32, #tpu.memory_space<vmem>>, %arg3: memref<8x128xf32, #tpu.memory_space<vmem>>) attributes {dimension_semantics = [#tpu.dimension_semantics<parallel>], iteration_bounds = array<i64: 2>, scalar_prefetch = 1 : i64, scratch_operands = 0 : i64, tpu.core_type = #tpu.core_type<tc>, window_params = [{transform_indices = @transform_0, window_bounds = array<i64: 8, 128>}, {transform_indices = @transform_1, window_bounds = array<i64: 8, 128>}]} {
    %c0 = arith.constant 0 : index
    %0 = memref.load %arg1[%c0] : memref<1xf32, #tpu.memory_space<smem>>
    %c0_0 = arith.constant 0 : index
    %c0_1 = arith.constant 0 : index
    %1 = vector.load %arg2[%c0_0, %c0_1] : memref<8x128xf32, #tpu.memory_space<vmem>>, vector<8x128xf32>
    %cst = arith.constant 0.000000e+00 : f32
    %2 = vector.broadcast %cst : f32 to vector<8x128xf32>
    %3 = arith.maximumf %1, %2 : vector<8x128xf32>
    %4 = vector.broadcast %0 : f32 to vector<8x128xf32>
    %5 = arith.mulf %4, %3 : vector<8x128xf32>
    %c0_2 = arith.constant 0 : index
    %c0_3 = arith.constant 0 : index
    %6 = vector.load %arg3[%c0_2, %c0_3] : memref<8x128xf32, #tpu.memory_space<vmem>>, vector<8x128xf32>
    tpu.vector_store %arg3[%c0_2, %c0_3], %5 {strides = array<i32>} : memref<8x128xf32, #tpu.memory_space<vmem>>, vector<8x128xf32>,
    return
  }
  func.func @transform_0(%arg0: i32, %arg1: memref<1xf32, #tpu.memory_space<smem>>) -> (i32, i32) {
    %c0_i32 = arith.constant 0 : i32
    %c0_i32_0 = arith.constant 0 : i32
    return %arg0, %c0_i32 : i32, i32
  }
  func.func @transform_1(%arg0: i32, %arg1: memref<1xf32, #tpu.memory_space<smem>>) -> (i32, i32) {
    %c0_i32 = arith.constant 0 : i32
    %c0_i32_0 = arith.constant 0 : i32
    return %arg0, %c0_i32 : i32, i32
  }
}

</mosaic_0001>

<llo_original>
// kernel: tpu_custom_call.1
$region0: #{tpu_custom_call.1}
  #allocation0 [shape = 'u32[]', space=smem, size = 0x4, offset = 0x4, fixed_abs, tag = 'smem constant byte address 0x4 - core index']
  #allocation1 [shape = 'u32[144,128]{1,0:T(1,128)}', space=vmem, size = 0x12000, scoped, tag = 'internal scratch']
  #allocation2 [shape = 's32[1]{0}', space=sflag, size = 0x4, scoped, tag = 'scoped memory for tpu_custom_call.1']
  #allocation3 [shape = 'f32[1]{0:T(128)S(6)}', space=smem, size = 0x200, scoped, tag = 'prefetched SMEM operand 0']
  %s0 = inlined_call_operand.<no memory space> [shape: f32[1], index: 0, kind: input, shape index: {}]
  %s1 = inlined_call_operand.hbm [shape: f32[16,128], index: 1, kind: input, shape index: {}]
  %s2 = inlined_call_operand.hbm [shape: f32[16,128], index: 2, kind: output, shape index: {}]
  %s3 = sld [smem:[#allocation0]]
  $region41: #{tpu_custom_call.1} parent=0
    _
  %s5 = ssub.s32 1, %s3
  %s6 = scalar_select 0, %s5, %s3
  %7 = sst [smem:[#allocation3]] %s0
  $region1: #{tpu_custom_call.1} parent=0
    #allocation4 [shape = 'u8[8192]{0}', space=vmem, size = 0x2000, scoped, tag = 'input window, operand 1']
    #allocation5 [shape = 's32[2]{0}', space=sflag, size = 0x8, scoped, tag = 'scoped memory for tpu_custom_call.1']
    #allocation6 [shape = 's32[2]{0}', space=sflag, size = 0x8, scoped, tag = 'scoped memory for tpu_custom_call.1']
    #allocation7 [shape = 'u8[8192]{0}', space=vmem, size = 0x2000, scoped, tag = 'output window, operand 0']
    %8 = vsyncpa [#allocation5], 0
    %s9 = scalar_lea.sflag [#allocation5], 1
    %10 = vsyncpa %s9, 0
    %11 = vsyncpa [#allocation6], 0
    %s12 = scalar_lea.sflag [#allocation6], 1
    %13 = vsyncpa %s12, 0
    loop: start=0, step=1, limit=4
    $region2: #{tpu_custom_call.1} parent=1 // loop_pre_header
      _
    $region3: #{tpu_custom_call.1} parent=1 // loop_header
      %s15 = sphi 0, %s19
      %p16 = scmp.ge.s32.totalorder %s15, 4
      %s25 = sphi 0, %s27
      %s28 = sphi 0, %s25
      %s29 = sphi 0, %s28
      %s45 = sphi 0, %s29
      %s51 = sphi 0, %s53
      %s54 = sphi 0, %s51
      %s55 = sphi 0, %s54
      %s71 = sphi 0, %s55
    $region4: #{tpu_custom_call.1} parent=1 // loop_header_branch
      %18 = sbr.rel (%p16) target = $region8
    $region5: #{tpu_custom_call.1} parent=1 // loop_body
      %s20 = ssub.s32 %s15, 1
      %s21 = ssub.s32 %s15, 2
      %s22 = sadd.s32 %s15, 1
      %s23 = ssub.s32 %s15, %s22
      %p24 = scmp.eq.s32.totalorder %s23, 0
      %s26 = sadd.s32 %s25, 1
      %s27 = scalar_select %p24, %s25, %s26
      %p30 = pneg %p24
      %p31 = scmp.eq.s32.totalorder %s15, 1
      %p32 = por %p30, %p31
      %p33 = scmp.ne.s32.totalorder %s25, %s28
      %p34 = scmp.eq.s32.totalorder %s15, 0
      %p35 = por %p33, %p34
      %p36 = scmp.ne.s32.totalorder %s25, %s28
      %p37 = scmp.eq.s32.totalorder %s20, 1
      %p38 = por %p36, %p37
      %p39 = scmp.ne.s32.totalorder %s28, %s29
      %p40 = scmp.eq.s32.totalorder %s20, 0
      %p41 = por %p39, %p40
      %p42 = scmp.ne.s32.totalorder %s28, %s29
      %p43 = scmp.eq.s32.totalorder %s21, 1
      %p44 = por %p42, %p43
      %p46 = scmp.ne.s32.totalorder %s29, %s45
      %p47 = scmp.eq.s32.totalorder %s21, 0
      %p48 = por %p46, %p47
      %s49 = ssub.s32 %s15, %s22
      %p50 = scmp.eq.s32.totalorder %s49, 0
      %s52 = sadd.s32 %s51, 1
      %s53 = scalar_select %p50, %s51, %s52
      %p56 = pneg %p50
      %p57 = scmp.eq.s32.totalorder %s15, 1
      %p58 = por %p56, %p57
      %p59 = scmp.ne.s32.totalorder %s51, %s54
      %p60 = scmp.eq.s32.totalorder %s15, 0
      %p61 = por %p59, %p60
      %p62 = scmp.ne.s32.totalorder %s51, %s54
      %p63 = scmp.eq.s32.totalorder %s20, 1
      %p64 = por %p62, %p63
      %p65 = scmp.ne.s32.totalorder %s54, %s55
      %p66 = scmp.eq.s32.totalorder %s20, 0
      %p67 = por %p65, %p66
      %p68 = scmp.ne.s32.totalorder %s54, %s55
      %p69 = scmp.eq.s32.totalorder %s21, 1
      %p70 = por %p68, %p69
      %p72 = scmp.ne.s32.totalorder %s55, %s71
      %p73 = scmp.eq.s32.totalorder %s21, 0
      %p74 = por %p72, %p73
      %p75 = scmp.le.s32.totalorder 1, %s15
      %p76 = scmp.lt.s32.totalorder %s15, 3
      %p77 = pnand %p75, %p76
      %p78 = pneg %p77
      // Predicated region
      $region9: #{tpu_custom_call.1} parent=5 // pred_check
        _
      $region10: #{tpu_custom_call.1} parent=5 // pred_check_branch
        %80 = sbr.rel (%p77) target = $region12
      $region11: #{tpu_custom_call.1} parent=5 // pred_region
        %s81 = ssub.s32 %s15, 1
      $region12: #{tpu_custom_call.1} parent=5 // pred_fallthru
        _
      %p82 = scmp.lt.s32.totalorder %s15, 2
      // Predicated region
      $region13: #{tpu_custom_call.1} parent=5 // pred_check
        %p83 = pneg %p82
      $region14: #{tpu_custom_call.1} parent=5 // pred_check_branch
        %85 = sbr.rel (%p83) target = $region16
      $region15: #{tpu_custom_call.1} parent=5 // pred_region
        // Predicated region
        $region17: #{tpu_custom_call.1} parent=15 // pred_check
          %p86 = pneg %p35
        $region18: #{tpu_custom_call.1} parent=15 // pred_check_branch
          %88 = sbr.rel (%p86) target = $region20
        $region19: #{tpu_custom_call.1} parent=15 // pred_region
          %s89 = sand.u32 %s25, 1
          %s90 = scalar_lea.sflag [#allocation5], %s89
          %s91 = sand.u32 %s25, 1
          %s92 = smul.addr %s91, 8
          %s93 = scalar_lea.vmem [#allocation4], %s92
          %s95 = ssub.s32 128, 128
          %96 = vsyncadd %s90, %s95
          %s97 = smul.addr %s15, 128
          %s98 = scalar_lea.hbm %s1, %s97
          %s100 = sshll.u32 %s93, 4
          %s101 = int_to_ptr.vmem [resolvable:$true] %s100
          %103 = dma.hbm_to_vmem [thread:$0]  %s98, 128, %s101, %s90
        $region20: #{tpu_custom_call.1} parent=15 // pred_fallthru
          _
      $region16: #{tpu_custom_call.1} parent=5 // pred_fallthru
        _
      %p104 = scmp.le.s32.totalorder 1, %s15
      %p105 = scmp.lt.s32.totalorder %s15, 3
      %p106 = pnand %p104, %p105
      %p107 = pneg %p106
      // Predicated region
      $region21: #{tpu_custom_call.1} parent=5 // pred_check
        _
      $region22: #{tpu_custom_call.1} parent=5 // pred_check_branch
        %109 = sbr.rel (%p106) target = $region24
      $region23: #{tpu_custom_call.1} parent=5 // pred_region
        %s110 = ssub.s32 %s15, 1
        %s111 = sand.u32 %s28, 1
        %s112 = scalar_lea.sflag [#allocation5], %s111
        %s113 = sand.u32 %s28, 1
        %s114 = smul.addr %s113, 8
        %s115 = scalar_lea.vmem [#allocation4], %s114
        // Predicated region
        $region25: #{tpu_custom_call.1} parent=23 // pred_check
          %p116 = pneg %p41
        $region26: #{tpu_custom_call.1} parent=23 // pred_check_branch
          %118 = sbr.rel (%p116) target = $region28
        $region27: #{tpu_custom_call.1} parent=23 // pred_region
          %119 = dma.done %s112, 128
        $region28: #{tpu_custom_call.1} parent=23 // pred_fallthru
          _
        %s120 = sand.u32 %s28, 1
        %s121 = scalar_lea.sflag [#allocation5], %s120
        %s122 = sand.u32 %s28, 1
        %s123 = smul.addr %s122, 8
        %s124 = scalar_lea.vmem [#allocation4], %s123
        %p125 = pneg %p41
        %p126 = pneg %p38
        %p127 = pneg %p67
        %p128 = pneg %p64
        %s129 = sand.u32 %s54, 1
        %s130 = scalar_lea.sflag [#allocation6], %s129
        %s131 = sand.u32 %s54, 1
        %s132 = smul.addr %s131, 8
        %s133 = scalar_lea.vmem [#allocation7], %s132
        %s134 = sld [smem:[#allocation3]]
        %v135 = vld [vmem:[%s115] sm:$0xff]
        %v136 = vmax.f32 %v135, 0.0
        %v137 = vstv %s134
        %v138 = vmul.f32 %v137, %v136
        %139 = vst [vmem:[%s133] sm:$0xff] %v138
        %s140 = sand.u32 %s54, 1
        %s141 = scalar_lea.sflag [#allocation6], %s140
        %s142 = sand.u32 %s54, 1
        %s143 = smul.addr %s142, 8
        %s144 = scalar_lea.vmem [#allocation7], %s143
        // Predicated region
        $region29: #{tpu_custom_call.1} parent=23 // pred_check
          %p145 = pneg %p64
        $region30: #{tpu_custom_call.1} parent=23 // pred_check_branch
          %147 = sbr.rel (%p145) target = $region32
        $region31: #{tpu_custom_call.1} parent=23 // pred_region
          %s149 = ssub.s32 128, 128
          %150 = vsyncadd %s141, %s149
          %s151 = smul.addr %s20, 128
          %s152 = scalar_lea.hbm %s2, %s151
          %s154 = sshll.u32 %s144, 4
          %s155 = int_to_ptr.vmem [resolvable:$true] %s154
          %157 = dma.vmem_to_hbm [thread:$0]  %s155, 128, %s152, %s141
        $region32: #{tpu_custom_call.1} parent=23 // pred_fallthru
          _
      $region24: #{tpu_custom_call.1} parent=5 // pred_fallthru
        _
      %p158 = scmp.le.s32.totalorder 2, %s15
      // Predicated region
      $region33: #{tpu_custom_call.1} parent=5 // pred_check
        %p159 = pneg %p158
      $region34: #{tpu_custom_call.1} parent=5 // pred_check_branch
        %161 = sbr.rel (%p159) target = $region36
      $region35: #{tpu_custom_call.1} parent=5 // pred_region
        %s162 = ssub.s32 %s15, 2
        // Predicated region
        $region37: #{tpu_custom_call.1} parent=35 // pred_check
          %p163 = pneg %p70
        $region38: #{tpu_custom_call.1} parent=35 // pred_check_branch
          %165 = sbr.rel (%p163) target = $region40
        $region39: #{tpu_custom_call.1} parent=35 // pred_region
          %s166 = sand.u32 %s55, 1
          %s167 = scalar_lea.sflag [#allocation6], %s166
          %s168 = sand.u32 %s55, 1
          %s169 = smul.addr %s168, 8
          %s170 = scalar_lea.vmem [#allocation7], %s169
          %171 = dma.done %s167, 128
        $region40: #{tpu_custom_call.1} parent=35 // pred_fallthru
          _
      $region36: #{tpu_custom_call.1} parent=5 // pred_fallthru
        _
    $region6: #{tpu_custom_call.1} parent=1 // loop_footer
      %s19 = sadd.s32 1, %s15
    $region7: #{tpu_custom_call.1} parent=1 // loop_footer_branch
      %14 = sbr.rel target = $region3
    $region8: #{tpu_custom_call.1} parent=1 // loop_exit
      _
    %172 = vsyncpa [#allocation5], 1
    %s173 = scalar_lea.sflag [#allocation5], 1
    %174 = vsyncpa %s173, 1
    %175 = vsyncpa [#allocation6], 1
    %s176 = scalar_lea.sflag [#allocation6], 1
    %177 = vsyncpa %s176, 1

</llo_original>
